<compile_context>
chip_gen: v7x
topology: tpu7x:2x2x1
jax: 0.10.0
libtpu: 0.0.40
codegen_flags: <defaults>
</compile_context>

<pallas_src>
import functools

import jax
import jax.numpy as jnp
from jax.experimental import pallas as pl
from jax.experimental.pallas import tpu as pltpu


_NEG_BIG = -1000000000.0  # same constant as the PyTorch masked_fill


# ---------------------------------------------------------------------------
# Kernel
# ---------------------------------------------------------------------------
def _sdpa_kernel(*refs, temperature, has_mask):
    if has_mask:
        q_ref, k_ref, v_ref, mask_ref, out_ref, attn_ref = refs
    else:
        q_ref, k_ref, v_ref, out_ref, attn_ref = refs
        mask_ref = None

    q = q_ref[...]          # (TH, TQ, D)
    k = k_ref[...]          # (TH, Lk, D)
    v = v_ref[...]          # (TH, Lk, D)

    inv_temp = jnp.asarray(1.0 / temperature, dtype=q.dtype)
    q_scaled = q * inv_temp                                   # scale TQ*D elems

    # (q/temp) @ k^T, batched over the head-block axis, contracting the last
    # dims of both operands (no transpose of k), f32 accumulation on the MXU.
    s = jax.lax.dot_general(
        q_scaled, k,
        dimension_numbers=(((2,), (2,)), ((0,), (0,))),
        preferred_element_type=jnp.float32)                   # (TH, TQ, Lk) f32

    if mask_ref is not None:
        # mask tile is (1 or TH, TQ, Lk) int8; broadcasts against s.
        m = mask_ref[...].astype(jnp.float32)
        s = jnp.where(m != 0.0, jnp.float32(_NEG_BIG), s)

    # numerically stabilized softmax along Lk
    s_max = jnp.max(s, axis=-1, keepdims=True)
    p = jnp.exp(s - s_max)
    denom = jnp.sum(p, axis=-1, keepdims=True)
    attn = p * pl.reciprocal(denom, approx=True)              # EUP, not VPU div

    out = jax.lax.dot_general(
        attn.astype(v.dtype), v,
        dimension_numbers=(((2,), (1,)), ((0,), (0,))),
        preferred_element_type=jnp.float32)                   # (TH, TQ, D) f32

    out_ref[...] = out.astype(out_ref.dtype)
    attn_ref[...] = attn.astype(attn_ref.dtype)


# ---------------------------------------------------------------------------
# Tiling selection
# ---------------------------------------------------------------------------
def _divisors_desc(n):
    return [d for d in range(n, 0, -1) if n % d == 0]


def _q_tile_candidates(lq):
    """Divisors of Lq that satisfy the (8, 128) block rule: full Lq, or
    a multiple of 8 (capped at 512 to keep tiles pipeline-friendly)."""
    cands = [d for d in _divisors_desc(lq) if d == lq or (d % 8 == 0 and d <= 512)]
    return cands or [lq]


def _step_vmem_bytes(th, tq, lk, d, itemsize, mask_head_blk):
    q_out = 2 * th * tq * d * itemsize          # q tile + out tile
    kv = 2 * th * lk * d * itemsize             # k + v tiles
    attn = th * tq * lk * itemsize              # attn output tile
    msk = mask_head_blk * tq * lk               # int8 mask tile (0 if no mask)
    pipelined = 2 * (q_out + kv + attn + msk)   # Pallas double-buffers tiles
    f32_tmp = th * tq * lk * 4 + th * tq * d * 4
    return pipelined + f32_tmp


def _choose_tiling(h, lq, lk, d, itemsize, mask_per_head, has_mask,
                   budget=20 * 1024 * 1024):
    """Largest (head-block, q-tile) pair whose per-step footprint fits."""
    for th in _divisors_desc(h):
        mask_head_blk = (th if mask_per_head else 1) if has_mask else 0
        for tq in _q_tile_candidates(lq):
            if _step_vmem_bytes(th, tq, lk, d, itemsize, mask_head_blk) <= budget:
                return th, tq
    # Nothing fits the budget: smallest expressible tiling.
    return 1, _q_tile_candidates(lq)[-1]


# ---------------------------------------------------------------------------
# Wrapper
# ---------------------------------------------------------------------------
def scaled_dot_product_attention(q, k, v, mask=None, *, temperature):
    """q, k, v: (B, H, L, D).  mask: broadcastable to (B, H, Lq, Lk) or None.

    Returns (output, attn) like the PyTorch module (eval-mode dropout = identity).
    """
    B, H, Lq, D = q.shape
    Lk = k.shape[2]
    itemsize = jnp.dtype(q.dtype).itemsize

    has_mask = mask is not None
    mask_i8 = None
    if has_mask:
        m = jnp.asarray(mask)
        while m.ndim < 4:
            m = m[None]
        mb, mh = m.shape[0], m.shape[1]
        # keep size-1 batch/head dims compact (no replication in HBM),
        # broadcast the q/k dims fully so the kernel tile shapes are static.
        tb = 1 if mb == 1 else B
        th_m = 1 if mh == 1 else H
        mask_i8 = jnp.broadcast_to(m, (tb, th_m, Lq, Lk)).astype(jnp.int8)

    mask_per_head = bool(has_mask and mask_i8.shape[1] == H)
    TH, TQ = _choose_tiling(H, Lq, Lk, D, itemsize, mask_per_head, has_mask)
    n_hb = H // TH
    n_q = Lq // TQ
    grid = (B, n_hb, n_q)

    # Leading batch dim squeezed out of the kernel refs (block dim None).
    q_spec = pl.BlockSpec((None, TH, TQ, D), lambda b, hb, qi: (b, hb, qi, 0))
    kv_spec = pl.BlockSpec((None, TH, Lk, D), lambda b, hb, qi: (b, hb, 0, 0))
    out_spec = pl.BlockSpec((None, TH, TQ, D), lambda b, hb, qi: (b, hb, qi, 0))
    attn_spec = pl.BlockSpec((None, TH, TQ, Lk), lambda b, hb, qi: (b, hb, qi, 0))

    in_specs = [q_spec, kv_spec, kv_spec]
    args = [q, k, v]
    if has_mask:
        MB, MH = mask_i8.shape[0], mask_i8.shape[1]
        mh_blk = TH if MH == H else 1

        def mask_index(b, hb, qi, _mb=MB, _mh=MH, _h=H):
            return (b if _mb != 1 else 0, hb if _mh == _h else 0, qi, 0)

        in_specs.append(pl.BlockSpec((None, mh_blk, TQ, Lk), mask_index))
        args.append(mask_i8)

    kernel = functools.partial(_sdpa_kernel, temperature=temperature,
                               has_mask=has_mask)

    out, attn = pl.pallas_call(
        kernel,
        out_shape=(jax.ShapeDtypeStruct((B, H, Lq, D), q.dtype),
                   jax.ShapeDtypeStruct((B, H, Lq, Lk), q.dtype)),
        grid_spec=pltpu.PrefetchScalarGridSpec(
            num_scalar_prefetch=0,
            grid=grid,
            in_specs=in_specs,
            out_specs=[out_spec, attn_spec]),
        compiler_params=pltpu.CompilerParams(
            dimension_semantics=("parallel", "parallel", "parallel"),
            vmem_limit_bytes=48 * 1024 * 1024),
    )(*args)
    return out, attn


# ---------------------------------------------------------------------------
# Pure-JAX reference & self-test
# ---------------------------------------------------------------------------
def _reference(q, k, v, mask, temperature):
    s = jnp.einsum("bhqd,bhkd->bhqk", q / temperature, k)
    if mask is not None:
        s = jnp.where(mask, _NEG_BIG, s)
    attn = jax.nn.softmax(s, axis=-1)
    out = jnp.einsum("bhqk,bhkd->bhqd", attn, v)
    return out, attn


if __name__ == "__main__":
    # Module params (deterministic, small shapes consistent with the module)
    n_head = 4
    d_k = 32
    temperature = float(d_k) ** 0.5   # typical value: sqrt(d_k)

    B, Lq, Lk = 2, 8, 8

    key = jax.random.PRNGKey(0)
    kq, kk, kv_, km = jax.random.split(key, 4)
    q = jax.random.normal(kq, (B, n_head, Lq, d_k), dtype=jnp.float32)
    k = jax.random.normal(kk, (B, n_head, Lk, d_k), dtype=jnp.float32)
    v = jax.random.normal(kv_, (B, n_head, Lk, d_k), dtype=jnp.float32)
    mask = jax.random.bernoulli(km, 0.2, (B, 1, Lq, Lk))  # broadcast over heads

    out, attn = scaled_dot_product_attention(q, k, v, mask, temperature=temperature)
    out = jax.block_until_ready(out)
    attn = jax.block_until_ready(attn)

    ref_out, ref_attn = _reference(q, k, v, mask, temperature)
    # Tolerances account for the EUP approx-reciprocal in the softmax denom.
    assert jnp.allclose(out, ref_out, atol=5e-3, rtol=5e-3), "output mismatch"
    assert jnp.allclose(attn, ref_attn, atol=5e-3, rtol=5e-3), "attn mismatch"

    # Also exercise the mask=None path (no mask array is DMA'd at all).
    out2, attn2 = scaled_dot_product_attention(q, k, v, None,
                                               temperature=temperature)
    out2 = jax.block_until_ready(out2)
    ref_out2, ref_attn2 = _reference(q, k, v, None, temperature)
    assert jnp.allclose(out2, ref_out2, atol=5e-3, rtol=5e-3), "output mismatch (no mask)"
    assert jnp.allclose(attn2, ref_attn2, atol=5e-3, rtol=5e-3), "attn mismatch (no mask)"

    print("KERNEL_OK")
</pallas_src>

<mosaic_0001>
module attributes {stable_mosaic.version = 11 : i64} {
  func.func @_sdpa_kernel(%arg0: i32, %arg1: i32, %arg2: i32, %arg3: memref<1x4x8x32xf32, #tpu.memory_space<vmem>>, %arg4: memref<1x4x8x32xf32, #tpu.memory_space<vmem>>, %arg5: memref<1x4x8x32xf32, #tpu.memory_space<vmem>>, %arg6: memref<1x1x8x8xi8, #tpu.memory_space<vmem>>, %arg7: memref<1x4x8x32xf32, #tpu.memory_space<vmem>>, %arg8: memref<1x4x8x8xf32, #tpu.memory_space<vmem>>) attributes {dimension_semantics = [#tpu.dimension_semantics<parallel>, #tpu.dimension_semantics<parallel>, #tpu.dimension_semantics<parallel>], iteration_bounds = array<i64: 2, 1, 1>, scalar_prefetch = 0 : i64, scratch_operands = 0 : i64, tpu.core_type = #tpu.core_type<tc>, window_params = [{transform_indices = @transform_0, window_bounds = array<i64: 1, 4, 8, 32>}, {transform_indices = @transform_1, window_bounds = array<i64: 1, 4, 8, 32>}, {transform_indices = @transform_2, window_bounds = array<i64: 1, 4, 8, 32>}, {transform_indices = @transform_3, window_bounds = array<i64: 1, 1, 8, 8>}, {transform_indices = @transform_4, window_bounds = array<i64: 1, 4, 8, 32>}, {transform_indices = @transform_5, window_bounds = array<i64: 1, 4, 8, 8>}]} {
    %c0 = arith.constant 0 : index
    %c0_0 = arith.constant 0 : index
    %c0_1 = arith.constant 0 : index
    %c0_2 = arith.constant 0 : index
    %0 = vector.load %arg3[%c0, %c0_0, %c0_1, %c0_2] : memref<1x4x8x32xf32, #tpu.memory_space<vmem>>, vector<1x4x8x32xf32>
    %1 = vector.shape_cast %0 : vector<1x4x8x32xf32> to vector<4x8x32xf32>
    %c0_3 = arith.constant 0 : index
    %c0_4 = arith.constant 0 : index
    %c0_5 = arith.constant 0 : index
    %c0_6 = arith.constant 0 : index
    %2 = vector.load %arg4[%c0_3, %c0_4, %c0_5, %c0_6] : memref<1x4x8x32xf32, #tpu.memory_space<vmem>>, vector<1x4x8x32xf32>
    %3 = vector.shape_cast %2 : vector<1x4x8x32xf32> to vector<4x8x32xf32>
    %c0_7 = arith.constant 0 : index
    %c0_8 = arith.constant 0 : index
    %c0_9 = arith.constant 0 : index
    %c0_10 = arith.constant 0 : index
    %4 = vector.load %arg5[%c0_7, %c0_8, %c0_9, %c0_10] : memref<1x4x8x32xf32, #tpu.memory_space<vmem>>, vector<1x4x8x32xf32>
    %5 = vector.shape_cast %4 : vector<1x4x8x32xf32> to vector<4x8x32xf32>
    %cst = arith.constant 0.176776692 : f32
    %6 = vector.broadcast %cst : f32 to vector<4x8x32xf32>
    %7 = arith.mulf %1, %6 : vector<4x8x32xf32>
    %cst_11 = arith.constant dense<0.000000e+00> : vector<4x8x8xf32>
    %8 = tpu.matmul %7, %3, %cst_11 {dimension_numbers = #tpu.dot_dimension_numbers<[2], [2], [1], [1], [0, 0, 0, 1, 1, 1], [0], [0]>} : vector<4x8x32xf32>, vector<4x8x32xf32>, vector<4x8x8xf32> -> vector<4x8x8xf32>
    %c0_12 = arith.constant 0 : index
    %c0_13 = arith.constant 0 : index
    %c0_14 = arith.constant 0 : index
    %c0_15 = arith.constant 0 : index
    %9 = vector.load %arg6[%c0_12, %c0_13, %c0_14, %c0_15] : memref<1x1x8x8xi8, #tpu.memory_space<vmem>>, vector<1x1x8x8xi8>
    %10 = vector.shape_cast %9 : vector<1x1x8x8xi8> to vector<1x8x8xi8>
    %11 = arith.sitofp %10 : vector<1x8x8xi8> to vector<1x8x8xf32>
    %cst_16 = arith.constant 0.000000e+00 : f32
    %12 = vector.broadcast %cst_16 : f32 to vector<1x8x8xf32>
    %13 = arith.cmpf one, %11, %12 : vector<1x8x8xf32>
    %cst_17 = arith.constant -1.000000e+09 : f32
    %14 = vector.shape_cast %13 : vector<1x8x8xi1> to vector<1x8x8xi1>
    %15 = vector.broadcast %14 : vector<1x8x8xi1> to vector<4x8x8xi1>
    %16 = vector.broadcast %cst_17 : f32 to vector<4x8x8xf32>
    %17 = arith.select %15, %16, %8 : vector<4x8x8xi1>, vector<4x8x8xf32>
    %cst_18 = arith.constant dense<0xFF800000> : vector<4x8xf32>
    %18 = vector.multi_reduction <maximumf>, %17, %cst_18 [2] : vector<4x8x8xf32> to vector<4x8xf32>
    %19 = vector.shape_cast %18 : vector<4x8xf32> to vector<4x8x1xf32>
    %20 = vector.broadcast %19 : vector<4x8x1xf32> to vector<4x8x8xf32>
    %21 = arith.subf %17, %20 : vector<4x8x8xf32>
    %22 = math.exp %21 : vector<4x8x8xf32>
    %cst_19 = arith.constant dense<0.000000e+00> : vector<4x8xf32>
    %23 = vector.multi_reduction <add>, %22, %cst_19 [2] : vector<4x8x8xf32> to vector<4x8xf32>
    %24 = vector.shape_cast %23 : vector<4x8xf32> to vector<4x8x1xf32>
    %25 = tpu.reciprocal %24 {approx = true} : vector<4x8x1xf32> -> vector<4x8x1xf32>
    %26 = vector.broadcast %25 : vector<4x8x1xf32> to vector<4x8x8xf32>
    %27 = arith.mulf %22, %26 : vector<4x8x8xf32>
    %cst_20 = arith.constant dense<0.000000e+00> : vector<4x8x32xf32>
    %28 = tpu.matmul %27, %5, %cst_20 {dimension_numbers = #tpu.dot_dimension_numbers<[2], [1], [1], [2], [0, 0, 0, 1, 1, 2], [0], [0]>} : vector<4x8x8xf32>, vector<4x8x32xf32>, vector<4x8x32xf32> -> vector<4x8x32xf32>
    %c0_21 = arith.constant 0 : index
    %c0_22 = arith.constant 0 : index
    %c0_23 = arith.constant 0 : index
    %c0_24 = arith.constant 0 : index
    %29 = vector.load %arg7[%c0_21, %c0_22, %c0_23, %c0_24] : memref<1x4x8x32xf32, #tpu.memory_space<vmem>>, vector<1x4x8x32xf32>
    %30 = vector.shape_cast %29 : vector<1x4x8x32xf32> to vector<4x8x32xf32>
    %31 = vector.shape_cast %28 : vector<4x8x32xf32> to vector<1x4x8x32xf32>
    tpu.vector_store %arg7[%c0_21, %c0_22, %c0_23, %c0_24], %31 {strides = array<i32>} : memref<1x4x8x32xf32, #tpu.memory_space<vmem>>, vector<1x4x8x32xf32>,
    %c0_25 = arith.constant 0 : index
    %c0_26 = arith.constant 0 : index
    %c0_27 = arith.constant 0 : index
    %c0_28 = arith.constant 0 : index
    %32 = vector.load %arg8[%c0_25, %c0_26, %c0_27, %c0_28] : memref<1x4x8x8xf32, #tpu.memory_space<vmem>>, vector<1x4x8x8xf32>
    %33 = vector.shape_cast %32 : vector<1x4x8x8xf32> to vector<4x8x8xf32>
    %34 = vector.shape_cast %27 : vector<4x8x8xf32> to vector<1x4x8x8xf32>
    tpu.vector_store %arg8[%c0_25, %c0_26, %c0_27, %c0_28], %34 {strides = array<i32>} : memref<1x4x8x8xf32, #tpu.memory_space<vmem>>, vector<1x4x8x8xf32>,
    return
  }
  func.func @transform_0(%arg0: i32, %arg1: i32, %arg2: i32) -> (i32, i32, i32, i32) {
    %c0_i32 = arith.constant 0 : i32
    %c0_i32_0 = arith.constant 0 : i32
    return %arg0, %arg1, %arg2, %c0_i32 : i32, i32, i32, i32
  }
  func.func @transform_1(%arg0: i32, %arg1: i32, %arg2: i32) -> (i32, i32, i32, i32) {
    %c0_i32 = arith.constant 0 : i32
    %c0_i32_0 = arith.constant 0 : i32
    %c0_i32_1 = arith.constant 0 : i32
    return %arg0, %arg1, %c0_i32, %c0_i32_0 : i32, i32, i32, i32
  }
  func.func @transform_2(%arg0: i32, %arg1: i32, %arg2: i32) -> (i32, i32, i32, i32) {
    %c0_i32 = arith.constant 0 : i32
    %c0_i32_0 = arith.constant 0 : i32
    %c0_i32_1 = arith.constant 0 : i32
    return %arg0, %arg1, %c0_i32, %c0_i32_0 : i32, i32, i32, i32
  }
  func.func @transform_3(%arg0: i32, %arg1: i32, %arg2: i32) -> (i32, i32, i32, i32) {
    %c0_i32 = arith.constant 0 : i32
    %c0_i32_0 = arith.constant 0 : i32
    %c0_i32_1 = arith.constant 0 : i32
    return %arg0, %c0_i32, %arg2, %c0_i32_0 : i32, i32, i32, i32
  }
  func.func @transform_4(%arg0: i32, %arg1: i32, %arg2: i32) -> (i32, i32, i32, i32) {
    %c0_i32 = arith.constant 0 : i32
    %c0_i32_0 = arith.constant 0 : i32
    return %arg0, %arg1, %arg2, %c0_i32 : i32, i32, i32, i32
  }
  func.func @transform_5(%arg0: i32, %arg1: i32, %arg2: i32) -> (i32, i32, i32, i32) {
    %c0_i32 = arith.constant 0 : i32
    %c0_i32_0 = arith.constant 0 : i32
    return %arg0, %arg1, %arg2, %c0_i32 : i32, i32, i32, i32
  }
}

</mosaic_0001>

<llo_original>
// kernel: tpu_custom_call.1
$region0: #{tpu_custom_call.1}
  #allocation0 [shape = 'u32[]', space=smem, size = 0x4, offset = 0x4, fixed_abs, tag = 'smem constant byte address 0x4 - core index']
  #allocation1 [shape = 'u32[144,128]{1,0:T(1,128)}', space=vmem, size = 0x12000, scoped, tag = 'internal scratch']
  %s0 = inlined_call_operand.hbm [shape: f32[2,4,8,32], index: 0, kind: input, shape index: {}]
  %s1 = inlined_call_operand.hbm [shape: f32[2,4,8,32], index: 1, kind: input, shape index: {}]
  %s2 = inlined_call_operand.hbm [shape: f32[2,4,8,32], index: 2, kind: input, shape index: {}]
  %s3 = inlined_call_operand.vmem [shape: s8[2,1,8,8], index: 3, kind: input, shape index: {}]
  %s4 = inlined_call_operand.hbm [shape: f32[2,4,8,32], index: 4, kind: output, shape index: {0}]
  %s5 = inlined_call_operand.hbm [shape: f32[2,4,8,8], index: 5, kind: output, shape index: {1}]
  %6 = xla_tuple %s4, %s5
  %s7 = sld [smem:[#allocation0]]
  $region69: #{tpu_custom_call.1} parent=0
    _
  %s9 = ssub.s32 1, %s7
  %s10 = scalar_select 0, %s9, %s7
  $region1: #{tpu_custom_call.1} parent=0
    #allocation2 [shape = 'u8[32768]{0}', space=vmem, size = 0x8000, scoped, tag = 'input window, operand 0']
    #allocation3 [shape = 's32[2]{0}', space=sflag, size = 0x8, scoped, tag = 'scoped memory for tpu_custom_call.1']
    #allocation4 [shape = 's32[2]{0}', space=sflag, size = 0x8, scoped, tag = 'scoped memory for tpu_custom_call.1']
    #allocation5 [shape = 'u8[32768]{0}', space=vmem, size = 0x8000, scoped, tag = 'input window, operand 1']
    #allocation6 [shape = 's32[2]{0}', space=sflag, size = 0x8, scoped, tag = 'scoped memory for tpu_custom_call.1']
    #allocation7 [shape = 'u8[32768]{0}', space=vmem, size = 0x8000, scoped, tag = 'input window, operand 2']
    #allocation8 [shape = 'u8[32768]{0}', space=vmem, size = 0x8000, scoped, tag = 'output window, operand 0']
    #allocation9 [shape = 'u8[32768]{0}', space=vmem, size = 0x8000, scoped, tag = 'output window, operand 1']
    #allocation10 [shape = 's32[2]{0}', space=sflag, size = 0x8, scoped, tag = 'scoped memory for tpu_custom_call.1']
    %11 = vsyncpa [#allocation3], 0
    %s12 = scalar_lea.sflag [#allocation3], 1
    %13 = vsyncpa %s12, 0
    %14 = vsyncpa [#allocation6], 0
    %s15 = scalar_lea.sflag [#allocation6], 1
    %16 = vsyncpa %s15, 0
    %17 = vsyncpa [#allocation4], 0
    %s18 = scalar_lea.sflag [#allocation4], 1
    %19 = vsyncpa %s18, 0
    %20 = vsyncpa [#allocation10], 0
    %s21 = scalar_lea.sflag [#allocation10], 1
    %22 = vsyncpa %s21, 0
    loop: start=0, step=1, limit=4
    $region2: #{tpu_custom_call.1} parent=1 // loop_pre_header
      _
    $region3: #{tpu_custom_call.1} parent=1 // loop_header
      %s24 = sphi 0, %s28
      %p25 = scmp.ge.s32.totalorder %s24, 4
      %s31 = sphi 0, %s50
      %s32 = sphi 0, %s46
      %s33 = sphi 0, %s42
      %s34 = sphi 0, %s31
      %s35 = sphi 0, %s32
      %s36 = sphi 0, %s33
      %s37 = sphi 0, %s34
      %s38 = sphi 0, %s35
      %s39 = sphi 0, %s36
      %s57 = sphi 0, %s59
      %s60 = sphi 0, %s57
      %s61 = sphi 0, %s60
      %s77 = sphi 0, %s61
      %s85 = sphi 0, %s87
      %s88 = sphi 0, %s85
      %s89 = sphi 0, %s88
      %s105 = sphi 0, %s89
      %s113 = sphi 0, %s115
      %s116 = sphi 0, %s113
      %s117 = sphi 0, %s116
      %s133 = sphi 0, %s117
      %s141 = sphi 0, %s143
      %s144 = sphi 0, %s141
      %s145 = sphi 0, %s144
      %s161 = sphi 0, %s145
      %s171 = sphi 0, %s173
      %s174 = sphi 0, %s171
      %s175 = sphi 0, %s174
      %s191 = sphi 0, %s175
      %s201 = sphi 0, %s203
      %s204 = sphi 0, %s201
      %s205 = sphi 0, %s204
      %s221 = sphi 0, %s205
    $region4: #{tpu_custom_call.1} parent=1 // loop_header_branch
      %27 = sbr.rel (%p25) target = $region8
    $region5: #{tpu_custom_call.1} parent=1 // loop_body
      %s29 = ssub.s32 %s24, 1
      %s30 = ssub.s32 %s24, 2
      %s40 = sadd.s32 1, %s33
      %p41 = scmp.ge.s32.totalorder %s40, 1
      %s42 = scalar_select %p41, 0, %s40
      %s43 = sadd.s32 1, %s32
      %s44 = scalar_select %p41, %s43, %s32
      %p45 = scmp.ge.s32.totalorder %s44, 1
      %s46 = scalar_select %p45, 0, %s44
      %s47 = sadd.s32 1, %s31
      %s48 = scalar_select %p45, %s47, %s31
      %p49 = scmp.ge.s32.totalorder %s48, 2
      %s50 = scalar_select %p49, 0, %s48
      %s51 = ssub.s32 %s31, %s50
      %s52 = ssub.s32 %s32, %s46
      %s53 = sor.u32 %s51, %s52
      %s54 = ssub.s32 %s33, %s42
      %s55 = sor.u32 %s53, %s54
      %p56 = scmp.eq.s32.totalorder %s55, 0
      %s58 = sadd.s32 %s57, 1
      %s59 = scalar_select %p56, %s57, %s58
      %p62 = pneg %p56
      %p63 = scmp.eq.s32.totalorder %s24, 1
      %p64 = por %p62, %p63
      %p65 = scmp.ne.s32.totalorder %s57, %s60
      %p66 = scmp.eq.s32.totalorder %s24, 0
      %p67 = por %p65, %p66
      %p68 = scmp.ne.s32.totalorder %s57, %s60
      %p69 = scmp.eq.s32.totalorder %s29, 1
      %p70 = por %p68, %p69
      %p71 = scmp.ne.s32.totalorder %s60, %s61
      %p72 = scmp.eq.s32.totalorder %s29, 0
      %p73 = por %p71, %p72
      %p74 = scmp.ne.s32.totalorder %s60, %s61
      %p75 = scmp.eq.s32.totalorder %s30, 1
      %p76 = por %p74, %p75
      %p78 = scmp.ne.s32.totalorder %s61, %s77
      %p79 = scmp.eq.s32.totalorder %s30, 0
      %p80 = por %p78, %p79
      %s81 = ssub.s32 %s31, %s50
      %s82 = ssub.s32 %s32, %s46
      %s83 = sor.u32 %s81, %s82
      %p84 = scmp.eq.s32.totalorder %s83, 0
      %s86 = sadd.s32 %s85, 1
      %s87 = scalar_select %p84, %s85, %s86
      %p90 = pneg %p84
      %p91 = scmp.eq.s32.totalorder %s24, 1
      %p92 = por %p90, %p91
      %p93 = scmp.ne.s32.totalorder %s85, %s88
      %p94 = scmp.eq.s32.totalorder %s24, 0
      %p95 = por %p93, %p94
      %p96 = scmp.ne.s32.totalorder %s85, %s88
      %p97 = scmp.eq.s32.totalorder %s29, 1
      %p98 = por %p96, %p97
      %p99 = scmp.ne.s32.totalorder %s88, %s89
      %p100 = scmp.eq.s32.totalorder %s29, 0
      %p101 = por %p99, %p100
      %p102 = scmp.ne.s32.totalorder %s88, %s89
      %p103 = scmp.eq.s32.totalorder %s30, 1
      %p104 = por %p102, %p103
      %p106 = scmp.ne.s32.totalorder %s89, %s105
      %p107 = scmp.eq.s32.totalorder %s30, 0
      %p108 = por %p106, %p107
      %s109 = ssub.s32 %s31, %s50
      %s110 = ssub.s32 %s32, %s46
      %s111 = sor.u32 %s109, %s110
      %p112 = scmp.eq.s32.totalorder %s111, 0
      %s114 = sadd.s32 %s113, 1
      %s115 = scalar_select %p112, %s113, %s114
      %p118 = pneg %p112
      %p119 = scmp.eq.s32.totalorder %s24, 1
      %p120 = por %p118, %p119
      %p121 = scmp.ne.s32.totalorder %s113, %s116
      %p122 = scmp.eq.s32.totalorder %s24, 0
      %p123 = por %p121, %p122
      %p124 = scmp.ne.s32.totalorder %s113, %s116
      %p125 = scmp.eq.s32.totalorder %s29, 1
      %p126 = por %p124, %p125
      %p127 = scmp.ne.s32.totalorder %s116, %s117
      %p128 = scmp.eq.s32.totalorder %s29, 0
      %p129 = por %p127, %p128
      %p130 = scmp.ne.s32.totalorder %s116, %s117
      %p131 = scmp.eq.s32.totalorder %s30, 1
      %p132 = por %p130, %p131
      %p134 = scmp.ne.s32.totalorder %s117, %s133
      %p135 = scmp.eq.s32.totalorder %s30, 0
      %p136 = por %p134, %p135
      %s137 = ssub.s32 %s31, %s50
      %s138 = ssub.s32 %s33, %s42
      %s139 = sor.u32 %s137, %s138
      %p140 = scmp.eq.s32.totalorder %s139, 0
      %s142 = sadd.s32 %s141, 1
      %s143 = scalar_select %p140, %s141, %s142
      %p146 = pneg %p140
      %p147 = scmp.eq.s32.totalorder %s24, 1
      %p148 = por %p146, %p147
      %p149 = scmp.ne.s32.totalorder %s141, %s144
      %p150 = scmp.eq.s32.totalorder %s24, 0
      %p151 = por %p149, %p150
      %p152 = scmp.ne.s32.totalorder %s141, %s144
      %p153 = scmp.eq.s32.totalorder %s29, 1
      %p154 = por %p152, %p153
      %p155 = scmp.ne.s32.totalorder %s144, %s145
      %p156 = scmp.eq.s32.totalorder %s29, 0
      %p157 = por %p155, %p156
      %p158 = scmp.ne.s32.totalorder %s144, %s145
      %p159 = scmp.eq.s32.totalorder %s30, 1
      %p160 = por %p158, %p159
      %p162 = scmp.ne.s32.totalorder %s145, %s161
      %p163 = scmp.eq.s32.totalorder %s30, 0
      %p164 = por %p162, %p163
      %s165 = ssub.s32 %s31, %s50
      %s166 = ssub.s32 %s32, %s46
      %s167 = sor.u32 %s165, %s166
      %s168 = ssub.s32 %s33, %s42
      %s169 = sor.u32 %s167, %s168
      %p170 = scmp.eq.s32.totalorder %s169, 0
      %s172 = sadd.s32 %s171, 1
      %s173 = scalar_select %p170, %s171, %s172
      %p176 = pneg %p170
      %p177 = scmp.eq.s32.totalorder %s24, 1
      %p178 = por %p176, %p177
      %p179 = scmp.ne.s32.totalorder %s171, %s174
      %p180 = scmp.eq.s32.totalorder %s24, 0
      %p181 = por %p179, %p180
      %p182 = scmp.ne.s32.totalorder %s171, %s174
      %p183 = scmp.eq.s32.totalorder %s29, 1
      %p184 = por %p182, %p183
      %p185 = scmp.ne.s32.totalorder %s174, %s175
      %p186 = scmp.eq.s32.totalorder %s29, 0
      %p187 = por %p185, %p186
      %p188 = scmp.ne.s32.totalorder %s174, %s175
      %p189 = scmp.eq.s32.totalorder %s30, 1
      %p190 = por %p188, %p189
      %p192 = scmp.ne.s32.totalorder %s175, %s191
      %p193 = scmp.eq.s32.totalorder %s30, 0
      %p194 = por %p192, %p193
      %s195 = ssub.s32 %s31, %s50
      %s196 = ssub.s32 %s32, %s46
      %s197 = sor.u32 %s195, %s196
      %s198 = ssub.s32 %s33, %s42
      %s199 = sor.u32 %s197, %s198
      %p200 = scmp.eq.s32.totalorder %s199, 0
      %s202 = sadd.s32 %s201, 1
      %s203 = scalar_select %p200, %s201, %s202
      %p206 = pneg %p200
      %p207 = scmp.eq.s32.totalorder %s24, 1
      %p208 = por %p206, %p207
      %p209 = scmp.ne.s32.totalorder %s201, %s204
      %p210 = scmp.eq.s32.totalorder %s24, 0
      %p211 = por %p209, %p210
      %p212 = scmp.ne.s32.totalorder %s201, %s204
      %p213 = scmp.eq.s32.totalorder %s29, 1
      %p214 = por %p212, %p213
      %p215 = scmp.ne.s32.totalorder %s204, %s205
      %p216 = scmp.eq.s32.totalorder %s29, 0
      %p217 = por %p215, %p216
      %p218 = scmp.ne.s32.totalorder %s204, %s205
      %p219 = scmp.eq.s32.totalorder %s30, 1
      %p220 = por %p218, %p219
      %p222 = scmp.ne.s32.totalorder %s205, %s221
      %p223 = scmp.eq.s32.totalorder %s30, 0
      %p224 = por %p222, %p223
      %p225 = scmp.le.s32.totalorder 1, %s24
      %p226 = scmp.lt.s32.totalorder %s24, 3
      %p227 = pnand %p225, %p226
      %p228 = pneg %p227
      // Predicated region
      $region9: #{tpu_custom_call.1} parent=5 // pred_check
        _
      $region10: #{tpu_custom_call.1} parent=5 // pred_check_branch
        %230 = sbr.rel (%p227) target = $region12
      $region11: #{tpu_custom_call.1} parent=5 // pred_region
        %s231 = ssub.s32 %s24, 1
      $region12: #{tpu_custom_call.1} parent=5 // pred_fallthru
        _
      %p232 = scmp.lt.s32.totalorder %s24, 2
      // Predicated region
      $region13: #{tpu_custom_call.1} parent=5 // pred_check
        %p233 = pneg %p232
      $region14: #{tpu_custom_call.1} parent=5 // pred_check_branch
        %235 = sbr.rel (%p233) target = $region16
      $region15: #{tpu_custom_call.1} parent=5 // pred_region
        // Predicated region
        $region17: #{tpu_custom_call.1} parent=15 // pred_check
          %p236 = pneg %p67
        $region18: #{tpu_custom_call.1} parent=15 // pred_check_branch
          %238 = sbr.rel (%p236) target = $region20
        $region19: #{tpu_custom_call.1} parent=15 // pred_region
          %s239 = sand.u32 %s57, 1
          %s240 = scalar_lea.sflag [#allocation3], %s239
          %s241 = sand.u32 %s57, 1
          %s242 = smul.addr %s241, 32
          %s243 = scalar_lea.vmem [#allocation2], %s242
          %s244 = smul.u32 4, %s32
          %s246 = ssub.s32 512, 512
          %247 = vsyncadd %s240, %s246
          %s248 = sadd.s32 %s33, %s244
          %s249 = smul.addr %s31, 4
          %s250 = sadd.s32 %s248, %s249
          %s251 = smul.addr %s250, 128
          %s252 = scalar_lea.hbm %s0, %s251
          %s253 = sshll.u32 %s243, 4
          %s254 = int_to_ptr.vmem [resolvable:$true] %s253
          %259 = dma.hbm_to_vmem [thread:$0]  %s252, 512, %s254, %s240, 128, 128, 8
        $region20: #{tpu_custom_call.1} parent=15 // pred_fallthru
          _
        // Predicated region
        $region21: #{tpu_custom_call.1} parent=15 // pred_check
          %p260 = pneg %p95
        $region22: #{tpu_custom_call.1} parent=15 // pred_check_branch
          %262 = sbr.rel (%p260) target = $region24
        $region23: #{tpu_custom_call.1} parent=15 // pred_region
          %s263 = sand.u32 %s24, 1
          %s264 = scalar_lea.sflag [#allocation6], %s263
          %s265 = sand.u32 %s85, 1
          %s266 = smul.addr %s265, 32
          %s267 = scalar_lea.vmem [#allocation5], %s266
          %s268 = smul.u32 4, %s32
          %s270 = ssub.s32 512, 512
          %271 = vsyncadd %s264, %s270
          %s272 = smul.addr %s31, 4
          %s273 = sadd.s32 %s268, %s272
          %s274 = smul.addr %s273, 128
          %s275 = scalar_lea.hbm %s1, %s274
          %s276 = sshll.u32 %s267, 4
          %s277 = int_to_ptr.vmem [resolvable:$true] %s276
          %282 = dma.hbm_to_vmem [thread:$0]  %s275, 512, %s277, %s264, 128, 128, 8
        $region24: #{tpu_custom_call.1} parent=15 // pred_fallthru
          _
        // Predicated region
        $region25: #{tpu_custom_call.1} parent=15 // pred_check
          %p283 = pneg %p123
        $region26: #{tpu_custom_call.1} parent=15 // pred_check_branch
          %285 = sbr.rel (%p283) target = $region28
        $region27: #{tpu_custom_call.1} parent=15 // pred_region
          %s286 = sand.u32 %s24, 1
          %s287 = scalar_lea.sflag [#allocation6], %s286
          %s288 = sand.u32 %s113, 1
          %s289 = smul.addr %s288, 32
          %s290 = scalar_lea.vmem [#allocation7], %s289
          %s291 = smul.u32 4, %s32
          %s293 = ssub.s32 512, 512
          %294 = vsyncadd %s287, %s293
          %s295 = smul.addr %s31, 4
          %s296 = sadd.s32 %s291, %s295
          %s297 = smul.addr %s296, 128
          %s298 = scalar_lea.hbm %s2, %s297
          %s299 = sshll.u32 %s290, 4
          %s300 = int_to_ptr.vmem [resolvable:$true] %s299
          %305 = dma.hbm_to_vmem [thread:$0]  %s298, 512, %s300, %s287, 128, 128, 8
        $region28: #{tpu_custom_call.1} parent=15 // pred_fallthru
          _
        // Predicated region
        $region29: #{tpu_custom_call.1} parent=15 // pred_check
          %p306 = pneg %p151
        $region30: #{tpu_custom_call.1} parent=15 // pred_check_branch
          %308 = sbr.rel (%p306) target = $region32
        $region31: #{tpu_custom_call.1} parent=15 // pred_region
          %p309 = scmp.lt.s32.totalorder %s31, 1
          %s310 = scalar_select %p309, %s31, 1
          %p311 = scmp.lt.s32.totalorder %s33, 0
          %s312 = scalar_select %p311, %s33, 0
          %s313 = sadd.s32 %s312, %s310
          %s314 = smul.addr %s313, 2
          %s315 = scalar_lea.vmem %s3, %s314
        $region32: #{tpu_custom_call.1} parent=15 // pred_fallthru
          _
      $region16: #{tpu_custom_call.1} parent=5 // pred_fallthru
        _
      %p316 = scmp.le.s32.totalorder 1, %s24
      %p317 = scmp.lt.s32.totalorder %s24, 3
      %p318 = pnand %p316, %p317
      %p319 = pneg %p318
      // Predicated region
      $region33: #{tpu_custom_call.1} parent=5 // pred_check
        _
      $region34: #{tpu_custom_call.1} parent=5 // pred_check_branch
        %321 = sbr.rel (%p318) target = $region36
      $region35: #{tpu_custom_call.1} parent=5 // pred_region
        %s322 = ssub.s32 %s24, 1
        %s323 = sand.u32 %s60, 1
        %s324 = scalar_lea.sflag [#allocation3], %s323
        %s325 = sand.u32 %s60, 1
        %s326 = smul.addr %s325, 32
        %s327 = scalar_lea.vmem [#allocation2], %s326
        // Predicated region
        $region37: #{tpu_custom_call.1} parent=35 // pred_check
          %p328 = pneg %p73
        $region38: #{tpu_custom_call.1} parent=35 // pred_check_branch
          %330 = sbr.rel (%p328) target = $region40
        $region39: #{tpu_custom_call.1} parent=35 // pred_region
          %331 = dma.done %s324, 512
        $region40: #{tpu_custom_call.1} parent=35 // pred_fallthru
          _
        %s332 = sand.u32 %s29, 1
        %s333 = scalar_lea.sflag [#allocation6], %s332
        %s334 = sand.u32 %s88, 1
        %s335 = smul.addr %s334, 32
        %s336 = scalar_lea.vmem [#allocation5], %s335
        // Predicated region
        $region41: #{tpu_custom_call.1} parent=35 // pred_check
          %p337 = pneg %p101
        $region42: #{tpu_custom_call.1} parent=35 // pred_check_branch
          %339 = sbr.rel (%p337) target = $region44
        $region43: #{tpu_custom_call.1} parent=35 // pred_region
          %340 = dma.done %s333, 512
        $region44: #{tpu_custom_call.1} parent=35 // pred_fallthru
          _
        %s341 = sand.u32 %s29, 1
        %s342 = scalar_lea.sflag [#allocation6], %s341
        %s343 = sand.u32 %s116, 1
        %s344 = smul.addr %s343, 32
        %s345 = scalar_lea.vmem [#allocation7], %s344
        // Predicated region
        $region45: #{tpu_custom_call.1} parent=35 // pred_check
          %p346 = pneg %p129
        $region46: #{tpu_custom_call.1} parent=35 // pred_check_branch
          %348 = sbr.rel (%p346) target = $region48
        $region47: #{tpu_custom_call.1} parent=35 // pred_region
          %349 = dma.done %s342, 512
        $region48: #{tpu_custom_call.1} parent=35 // pred_fallthru
          _
        %s350 = sand.u32 %s60, 1
        %s351 = scalar_lea.sflag [#allocation3], %s350
        %s352 = sand.u32 %s60, 1
        %s353 = smul.addr %s352, 32
        %s354 = scalar_lea.vmem [#allocation2], %s353
        %p355 = pneg %p73
        %p356 = pneg %p70
        %s357 = sand.u32 %s29, 1
        %s358 = scalar_lea.sflag [#allocation6], %s357
        %s359 = sand.u32 %s88, 1
        %s360 = smul.addr %s359, 32
        %s361 = scalar_lea.vmem [#allocation5], %s360
        %p362 = pneg %p101
        %p363 = pneg %p98
        %s364 = sand.u32 %s29, 1
        %s365 = scalar_lea.sflag [#allocation6], %s364
        %s366 = sand.u32 %s116, 1
        %s367 = smul.addr %s366, 32
        %s368 = scalar_lea.vmem [#allocation7], %s367
        %p369 = pneg %p129
        %p370 = pneg %p126
        %p371 = scmp.lt.s32.totalorder %s34, 1
        %s372 = scalar_select %p371, %s34, 1
        %p373 = scmp.lt.s32.totalorder %s36, 0
        %s374 = scalar_select %p373, %s36, 0
        %s375 = sadd.s32 %s374, %s372
        %s376 = smul.addr %s375, 2
        %s377 = scalar_lea.vmem %s3, %s376
        %p378 = pneg %p157
        %p379 = pneg %p154
        %p380 = pneg %p187
        %p381 = pneg %p184
        %s382 = sand.u32 %s174, 1
        %s383 = scalar_lea.sflag [#allocation4], %s382
        %s384 = sand.u32 %s174, 1
        %s385 = smul.addr %s384, 32
        %s386 = scalar_lea.vmem [#allocation8], %s385
        %p387 = pneg %p217
        %p388 = pneg %p214
        %s389 = sand.u32 %s204, 1
        %s390 = scalar_lea.sflag [#allocation10], %s389
        %s391 = sand.u32 %s204, 1
        %s392 = smul.addr %s391, 32
        %s393 = scalar_lea.vmem [#allocation9], %s392
        %s394 = smul.u32 4, %s35
        %s395 = smul.u32 4, %s35
        %s396 = smul.u32 4, %s35
        %p397 = scmp.lt.s32.totalorder %s34, 1
        %s398 = scalar_select %p397, %s34, 1
        %p399 = scmp.lt.s32.totalorder %s36, 0
        %s400 = scalar_select %p399, %s36, 0
        %s401 = sadd.s32 %s400, %s398
        %s402 = smul.addr %s401, 2
        %s403 = scalar_lea.vmem %s3, %s402
        %s404 = smul.u32 4, %s35
        %s405 = smul.u32 4, %s35
        %v406 = vld [vmem:[%s327] sm:$0xff]
        %v407 = vld [vmem:[%s327 + $0x8] sm:$0xff]
        %v408 = vld [vmem:[%s327 + $0x10] sm:$0xff]
        %v409 = vld [vmem:[%s327 + $0x18] sm:$0xff]
        %v410 = vld [vmem:[%s336] sm:$0xff]
        %v411 = vld [vmem:[%s336 + $0x8] sm:$0xff]
        %v412 = vld [vmem:[%s336 + $0x10] sm:$0xff]
        %v413 = vld [vmem:[%s336 + $0x18] sm:$0xff]
        %v414 = vld [vmem:[%s345] sm:$0xff]
        %v415 = vld [vmem:[%s345 + $0x8] sm:$0xff]
        %v416 = vld [vmem:[%s345 + $0x10] sm:$0xff]
        %v417 = vld [vmem:[%s345 + $0x18] sm:$0xff]
        %v418 = vmul.f32 %v406, 0.17677669
        %v419 = vmul.f32 %v407, 0.17677669
        %v420 = vmul.f32 %v408, 0.17677669
        %v421 = vmul.f32 %v409, 0.17677669
        %vm422 = vcmask 261120
        %v424 = vsel %vm422, %v418, 0
        %v427 = vsel %vm422, %v410, 0
        %429 = vmatprep.subr.mxu0 0.0
        %430 = vmatpush1.xpose.msra.mxu0 %v427
        %431 = vmatprep.subr.mxu0 0.0
        %432 = vmatpush1.xpose.msra.mxu0 0.0
        %433 = vmatprep.subr.mxu0 0.0
        %434 = vmatpush1.xpose.msra.mxu0 0.0
        %435 = vmatprep.subr.mxu0 0.0
        %436 = vmatpush1.xpose.msra.mxu0 0.0
        %437 = vmatprep.subr.mxu0 0.0
        %438 = vmatpush1.xpose.msra.mxu0 0.0
        %439 = vmatprep.subr.mxu0 0.0
        %440 = vmatpush1.xpose.msra.mxu0 0.0
        %441 = vmatprep.subr.mxu0 0.0
        %442 = vmatpush1.xpose.msra.mxu0 0.0
        %443 = vmatprep.subr.mxu0 0.0
        %444 = vmatpush1.xpose.msra.mxu0 0.0
        %445 = vmatprep.subr.mxu0 0.0
        %446 = vmatpush1.xpose.msra.mxu0 0.0
        %447 = vmatprep.subr.mxu0 0.0
        %448 = vmatpush1.xpose.msra.mxu0 0.0
        %449 = vmatprep.subr.mxu0 0.0
        %450 = vmatpush1.xpose.msra.mxu0 0.0
        %451 = vmatprep.subr.mxu0 0.0
        %452 = vmatpush1.xpose.msra.mxu0 0.0
        %453 = vmatprep.subr.mxu0 0.0
        %454 = vmatpush1.xpose.msra.mxu0 0.0
        %455 = vmatprep.subr.mxu0 0.0
        %456 = vmatpush1.xpose.msra.mxu0 0.0
        %457 = vmatprep.subr.mxu0 0.0
        %458 = vmatpush1.xpose.msra.mxu0 0.0
        %459 = vmatprep.subr.mxu0 0.0
        %460 = vmatpush1.xpose.msra.mxu0 0.0
        %461 = vmatprep.subr.mxu0 0.0
        %462 = vmatpush1.xpose.msra.mxu0 0.0
        %463 = vmatprep.subr.mxu0 0.0
        %464 = vmatpush1.xpose.msra.mxu0 0.0
        %465 = vmatprep.subr.mxu0 0.0
        %466 = vmatpush1.xpose.msra.mxu0 0.0
        %467 = vmatprep.subr.mxu0 0.0
        %468 = vmatpush1.xpose.msra.mxu0 0.0
        %469 = vmatprep.subr.mxu0 0.0
        %470 = vmatpush1.xpose.msra.mxu0 0.0
        %471 = vmatprep.subr.mxu0 0.0
        %472 = vmatpush1.xpose.msra.mxu0 0.0
        %473 = vmatprep.subr.mxu0 0.0
        %474 = vmatpush1.xpose.msra.mxu0 0.0
        %475 = vmatprep.subr.mxu0 0.0
        %476 = vmatpush1.xpose.msra.mxu0 0.0
        %477 = vmatprep.subr.mxu0 0.0
        %478 = vmatpush1.xpose.msra.mxu0 0.0
        %479 = vmatprep.subr.mxu0 0.0
        %480 = vmatpush1.xpose.msra.mxu0 0.0
        %481 = vmatprep.subr.mxu0 0.0
        %482 = vmatpush1.xpose.msra.mxu0 0.0
        %483 = vmatprep.subr.mxu0 0.0
        %484 = vmatpush1.xpose.msra.mxu0 0.0
        %485 = vmatprep.subr.mxu0 0.0
        %486 = vmatpush1.xpose.msra.mxu0 0.0
        %487 = vmatprep.subr.mxu0 0.0
        %488 = vmatpush1.xpose.msra.mxu0 0.0
        %489 = vmatprep.subr.mxu0 0.0
        %490 = vmatpush1.xpose.msra.mxu0 0.0
        %491 = vmatprep.subr.mxu0 0.0
        %492 = vmatpush1.xpose.msra.mxu0 0.0
        %493 = vmatprep.mubr.f32.mxu0 0.0
        %494 = vmatmul.mubr.f32.gmra.mrb[0].mxu0 %v424
        %v495 = vpop.f32.mrb[0].mxu0
        %v496 = vadd.f32 0.0, %v495
        %v497 = vpop.f32.mrb[0].mxu0
        %498 = vdwg.mxu0
        %v500 = vsel %vm422, %v419, 0
        %v503 = vsel %vm422, %v411, 0
        %505 = vmatprep.subr.mxu0 0.0
        %506 = vmatpush1.xpose.msra.mxu0 %v503
        %507 = vmatprep.subr.mxu0 0.0
        %508 = vmatpush1.xpose.msra.mxu0 0.0
        %509 = vmatprep.subr.mxu0 0.0
        %510 = vmatpush1.xpose.msra.mxu0 0.0
        %511 = vmatprep.subr.mxu0 0.0
        %512 = vmatpush1.xpose.msra.mxu0 0.0
        %513 = vmatprep.subr.mxu0 0.0
        %514 = vmatpush1.xpose.msra.mxu0 0.0
        %515 = vmatprep.subr.mxu0 0.0
        %516 = vmatpush1.xpose.msra.mxu0 0.0
        %517 = vmatprep.subr.mxu0 0.0
        %518 = vmatpush1.xpose.msra.mxu0 0.0
        %519 = vmatprep.subr.mxu0 0.0
        %520 = vmatpush1.xpose.msra.mxu0 0.0
        %521 = vmatprep.subr.mxu0 0.0
        %522 = vmatpush1.xpose.msra.mxu0 0.0
        %523 = vmatprep.subr.mxu0 0.0
        %524 = vmatpush1.xpose.msra.mxu0 0.0
        %525 = vmatprep.subr.mxu0 0.0
        %526 = vmatpush1.xpose.msra.mxu0 0.0
        %527 = vmatprep.subr.mxu0 0.0
        %528 = vmatpush1.xpose.msra.mxu0 0.0
        %529 = vmatprep.subr.mxu0 0.0
        %530 = vmatpush1.xpose.msra.mxu0 0.0
        %531 = vmatprep.subr.mxu0 0.0
        %532 = vmatpush1.xpose.msra.mxu0 0.0
        %533 = vmatprep.subr.mxu0 0.0
        %534 = vmatpush1.xpose.msra.mxu0 0.0
        %535 = vmatprep.subr.mxu0 0.0
        %536 = vmatpush1.xpose.msra.mxu0 0.0
        %537 = vmatprep.subr.mxu0 0.0
        %538 = vmatpush1.xpose.msra.mxu0 0.0
        %539 = vmatprep.subr.mxu0 0.0
        %540 = vmatpush1.xpose.msra.mxu0 0.0
        %541 = vmatprep.subr.mxu0 0.0
        %542 = vmatpush1.xpose.msra.mxu0 0.0
        %543 = vmatprep.subr.mxu0 0.0
        %544 = vmatpush1.xpose.msra.mxu0 0.0
        %545 = vmatprep.subr.mxu0 0.0
        %546 = vmatpush1.xpose.msra.mxu0 0.0
        %547 = vmatprep.subr.mxu0 0.0
        %548 = vmatpush1.xpose.msra.mxu0 0.0
        %549 = vmatprep.subr.mxu0 0.0
        %550 = vmatpush1.xpose.msra.mxu0 0.0
        %551 = vmatprep.subr.mxu0 0.0
        %552 = vmatpush1.xpose.msra.mxu0 0.0
        %553 = vmatprep.subr.mxu0 0.0
        %554 = vmatpush1.xpose.msra.mxu0 0.0
        %555 = vmatprep.subr.mxu0 0.0
        %556 = vmatpush1.xpose.msra.mxu0 0.0
        %557 = vmatprep.subr.mxu0 0.0
        %558 = vmatpush1.xpose.msra.mxu0 0.0
        %559 = vmatprep.subr.mxu0 0.0
        %560 = vmatpush1.xpose.msra.mxu0 0.0
        %561 = vmatprep.subr.mxu0 0.0
        %562 = vmatpush1.xpose.msra.mxu0 0.0
        %563 = vmatprep.subr.mxu0 0.0
        %564 = vmatpush1.xpose.msra.mxu0 0.0
        %565 = vmatprep.subr.mxu0 0.0
        %566 = vmatpush1.xpose.msra.mxu0 0.0
        %567 = vmatprep.subr.mxu0 0.0
        %568 = vmatpush1.xpose.msra.mxu0 0.0
        %569 = vmatprep.mubr.f32.mxu0 0.0
        %570 = vmatmul.mubr.f32.gmra.mrb[0].mxu0 %v500
        %v571 = vpop.f32.mrb[0].mxu0
        %v572 = vadd.f32 0.0, %v571
        %v573 = vpop.f32.mrb[0].mxu0
        %574 = vdwg.mxu0
        %v576 = vsel %vm422, %v420, 0
        %v579 = vsel %vm422, %v412, 0
        %581 = vmatprep.subr.mxu0 0.0
        %582 = vmatpush1.xpose.msra.mxu0 %v579
        %583 = vmatprep.subr.mxu0 0.0
        %584 = vmatpush1.xpose.msra.mxu0 0.0
        %585 = vmatprep.subr.mxu0 0.0
        %586 = vmatpush1.xpose.msra.mxu0 0.0
        %587 = vmatprep.subr.mxu0 0.0
        %588 = vmatpush1.xpose.msra.mxu0 0.0
        %589 = vmatprep.subr.mxu0 0.0
        %590 = vmatpush1.xpose.msra.mxu0 0.0
        %591 = vmatprep.subr.mxu0 0.0
        %592 = vmatpush1.xpose.msra.mxu0 0.0
        %593 = vmatprep.subr.mxu0 0.0
        %594 = vmatpush1.xpose.msra.mxu0 0.0
        %595 = vmatprep.subr.mxu0 0.0
        %596 = vmatpush1.xpose.msra.mxu0 0.0
        %597 = vmatprep.subr.mxu0 0.0
        %598 = vmatpush1.xpose.msra.mxu0 0.0
        %599 = vmatprep.subr.mxu0 0.0
        %600 = vmatpush1.xpose.msra.mxu0 0.0
        %601 = vmatprep.subr.mxu0 0.0
        %602 = vmatpush1.xpose.msra.mxu0 0.0
        %603 = vmatprep.subr.mxu0 0.0
        %604 = vmatpush1.xpose.msra.mxu0 0.0
        %605 = vmatprep.subr.mxu0 0.0
        %606 = vmatpush1.xpose.msra.mxu0 0.0
        %607 = vmatprep.subr.mxu0 0.0
        %608 = vmatpush1.xpose.msra.mxu0 0.0
        %609 = vmatprep.subr.mxu0 0.0
        %610 = vmatpush1.xpose.msra.mxu0 0.0
        %611 = vmatprep.subr.mxu0 0.0
        %612 = vmatpush1.xpose.msra.mxu0 0.0
        %613 = vmatprep.subr.mxu0 0.0
        %614 = vmatpush1.xpose.msra.mxu0 0.0
        %615 = vmatprep.subr.mxu0 0.0
        %616 = vmatpush1.xpose.msra.mxu0 0.0
        %617 = vmatprep.subr.mxu0 0.0
        %618 = vmatpush1.xpose.msra.mxu0 0.0
        %619 = vmatprep.subr.mxu0 0.0
        %620 = vmatpush1.xpose.msra.mxu0 0.0
        %621 = vmatprep.subr.mxu0 0.0
        %622 = vmatpush1.xpose.msra.mxu0 0.0
        %623 = vmatprep.subr.mxu0 0.0
        %624 = vmatpush1.xpose.msra.mxu0 0.0
        %625 = vmatprep.subr.mxu0 0.0
        %626 = vmatpush1.xpose.msra.mxu0 0.0
        %627 = vmatprep.subr.mxu0 0.0
        %628 = vmatpush1.xpose.msra.mxu0 0.0
        %629 = vmatprep.subr.mxu0 0.0
        %630 = vmatpush1.xpose.msra.mxu0 0.0
        %631 = vmatprep.subr.mxu0 0.0
        %632 = vmatpush1.xpose.msra.mxu0 0.0
        %633 = vmatprep.subr.mxu0 0.0
        %634 = vmatpush1.xpose.msra.mxu0 0.0
        %635 = vmatprep.subr.mxu0 0.0
        %636 = vmatpush1.xpose.msra.mxu0 0.0
        %637 = vmatprep.subr.mxu0 0.0
        %638 = vmatpush1.xpose.msra.mxu0 0.0
        %639 = vmatprep.subr.mxu0 0.0
        %640 = vmatpush1.xpose.msra.mxu0 0.0
        %641 = vmatprep.subr.mxu0 0.0
        %642 = vmatpush1.xpose.msra.mxu0 0.0
        %643 = vmatprep.subr.mxu0 0.0
        %644 = vmatpush1.xpose.msra.mxu0 0.0
        %645 = vmatprep.mubr.f32.mxu0 0.0
        %646 = vmatmul.mubr.f32.gmra.mrb[0].mxu0 %v576
        %v647 = vpop.f32.mrb[0].mxu0
        %v648 = vadd.f32 0.0, %v647
        %v649 = vpop.f32.mrb[0].mxu0
        %650 = vdwg.mxu0
        %v652 = vsel %vm422, %v421, 0
        %v655 = vsel %vm422, %v413, 0
        %657 = vmatprep.subr.mxu0 0.0
        %658 = vmatpush1.xpose.msra.mxu0 %v655
        %659 = vmatprep.subr.mxu0 0.0
        %660 = vmatpush1.xpose.msra.mxu0 0.0
        %661 = vmatprep.subr.mxu0 0.0
        %662 = vmatpush1.xpose.msra.mxu0 0.0
        %663 = vmatprep.subr.mxu0 0.0
        %664 = vmatpush1.xpose.msra.mxu0 0.0
        %665 = vmatprep.subr.mxu0 0.0
        %666 = vmatpush1.xpose.msra.mxu0 0.0
        %667 = vmatprep.subr.mxu0 0.0
        %668 = vmatpush1.xpose.msra.mxu0 0.0
        %669 = vmatprep.subr.mxu0 0.0
        %670 = vmatpush1.xpose.msra.mxu0 0.0
        %671 = vmatprep.subr.mxu0 0.0
        %672 = vmatpush1.xpose.msra.mxu0 0.0
        %673 = vmatprep.subr.mxu0 0.0
        %674 = vmatpush1.xpose.msra.mxu0 0.0
        %675 = vmatprep.subr.mxu0 0.0
        %676 = vmatpush1.xpose.msra.mxu0 0.0
        %677 = vmatprep.subr.mxu0 0.0
        %678 = vmatpush1.xpose.msra.mxu0 0.0
        %679 = vmatprep.subr.mxu0 0.0
        %680 = vmatpush1.xpose.msra.mxu0 0.0
        %681 = vmatprep.subr.mxu0 0.0
        %682 = vmatpush1.xpose.msra.mxu0 0.0
        %683 = vmatprep.subr.mxu0 0.0
        %684 = vmatpush1.xpose.msra.mxu0 0.0
        %685 = vmatprep.subr.mxu0 0.0
        %686 = vmatpush1.xpose.msra.mxu0 0.0
        %687 = vmatprep.subr.mxu0 0.0
        %688 = vmatpush1.xpose.msra.mxu0 0.0
        %689 = vmatprep.subr.mxu0 0.0
        %690 = vmatpush1.xpose.msra.mxu0 0.0
        %691 = vmatprep.subr.mxu0 0.0
        %692 = vmatpush1.xpose.msra.mxu0 0.0
        %693 = vmatprep.subr.mxu0 0.0
        %694 = vmatpush1.xpose.msra.mxu0 0.0
        %695 = vmatprep.subr.mxu0 0.0
        %696 = vmatpush1.xpose.msra.mxu0 0.0
        %697 = vmatprep.subr.mxu0 0.0
        %698 = vmatpush1.xpose.msra.mxu0 0.0
        %699 = vmatprep.subr.mxu0 0.0
        %700 = vmatpush1.xpose.msra.mxu0 0.0
        %701 = vmatprep.subr.mxu0 0.0
        %702 = vmatpush1.xpose.msra.mxu0 0.0
        %703 = vmatprep.subr.mxu0 0.0
        %704 = vmatpush1.xpose.msra.mxu0 0.0
        %705 = vmatprep.subr.mxu0 0.0
        %706 = vmatpush1.xpose.msra.mxu0 0.0
        %707 = vmatprep.subr.mxu0 0.0
        %708 = vmatpush1.xpose.msra.mxu0 0.0
        %709 = vmatprep.subr.mxu0 0.0
        %710 = vmatpush1.xpose.msra.mxu0 0.0
        %711 = vmatprep.subr.mxu0 0.0
        %712 = vmatpush1.xpose.msra.mxu0 0.0
        %713 = vmatprep.subr.mxu0 0.0
        %714 = vmatpush1.xpose.msra.mxu0 0.0
        %715 = vmatprep.subr.mxu0 0.0
        %716 = vmatpush1.xpose.msra.mxu0 0.0
        %717 = vmatprep.subr.mxu0 0.0
        %718 = vmatpush1.xpose.msra.mxu0 0.0
        %719 = vmatprep.subr.mxu0 0.0
        %720 = vmatpush1.xpose.msra.mxu0 0.0
        %721 = vmatprep.mubr.f32.mxu0 0.0
        %722 = vmatmul.mubr.f32.gmra.mrb[0].mxu0 %v652
        %v723 = vpop.f32.mrb[0].mxu0
        %v724 = vadd.f32 0.0, %v723
        %v725 = vpop.f32.mrb[0].mxu0
        %726 = vdwg.mxu0
        %v727 = vld [vmem:[%s403] sm:$0x3]
        %v728 = vunpack.c.0.s8 %v727
        %v729 = vcvt.s32.f32 %v728
        %vm730 = vcmp.ne.f32.partialorder %v729, 0.0
        %v731 = vsel %vm730, 1, 0
        %vm732 = vcmp.eq.s32.totalorder %v731, 1
        %v733 = vsel %vm732, -1e+09, %v496
        %v734 = vsel %vm732, -1e+09, %v572
        %v735 = vsel %vm732, -1e+09, %v648
        %v736 = vsel %vm732, -1e+09, %v724
        %vm737 = vcmask 64512
        %v738 = vsel %vm737, %v733, -inf
        %739 = vmax.xlane.f32.xlu0 %v738
        %v740 = vpop.xlane.xlu0 %739
        %v741 = vsel %vm737, %v734, -inf
        %742 = vmax.xlane.f32.xlu0 %v741
        %v743 = vpop.xlane.xlu0 %742
        %v744 = vsel %vm737, %v735, -inf
        %745 = vmax.xlane.f32.xlu0 %v744
        %v746 = vpop.xlane.xlu0 %745
        %v747 = vsel %vm737, %v736, -inf
        %748 = vmax.xlane.f32.xlu0 %v747
        %v749 = vpop.xlane.xlu0 %748
        %v750 = vsub.f32 %v733, %v740
        %v751 = vsub.f32 %v734, %v743
        %v752 = vsub.f32 %v735, %v746
        %v753 = vsub.f32 %v736, %v749
        %v754 = vmul.f32 %v750, 1.442695
        %v755 = vpow.pop %v754
        %v756 = vmul.f32 %v751, 1.442695
        %v757 = vpow.pop %v756
        %v758 = vmul.f32 %v752, 1.442695
        %v759 = vpow.pop %v758
        %v760 = vmul.f32 %v753, 1.442695
        %v761 = vpow.pop %v760
        %v762 = vsel %vm737, %v755, 0.0
        %763 = vadd.xlane.f32.xlu0 %v762
        %v764 = vpop.xlane.xlu0 %763
        %v765 = vsel %vm737, %v757, 0.0
        %766 = vadd.xlane.f32.xlu0 %v765
        %v767 = vpop.xlane.xlu0 %766
        %v768 = vsel %vm737, %v759, 0.0
        %769 = vadd.xlane.f32.xlu0 %v768
        %v770 = vpop.xlane.xlu0 %769
        %v771 = vsel %vm737, %v761, 0.0
        %772 = vadd.xlane.f32.xlu0 %v771
        %v773 = vpop.xlane.xlu0 %772
        %v774 = vrcp.pop %v764
        %v775 = vrcp.pop %v767
        %v776 = vrcp.pop %v770
        %v777 = vrcp.pop %v773
        %v778 = vmul.f32 %v755, %v774
        %v779 = vmul.f32 %v757, %v775
        %v780 = vmul.f32 %v759, %v776
        %v781 = vmul.f32 %v761, %v777
        %v783 = vsel %vm737, %v778, 0
        %785 = vmatprep.subr.mxu0 0.0
        %786 = vmatpush1.msra.mxu0 %v414
        %787 = vmatprep.subr.mxu0 0.0
        %788 = vmatpush1.msra.mxu0 0.0
        %789 = vmatprep.subr.mxu0 0.0
        %790 = vmatpush1.msra.mxu0 0.0
        %791 = vmatprep.subr.mxu0 0.0
        %792 = vmatpush1.msra.mxu0 0.0
        %793 = vmatprep.subr.mxu0 0.0
        %794 = vmatpush1.msra.mxu0 0.0
        %795 = vmatprep.subr.mxu0 0.0
        %796 = vmatpush1.msra.mxu0 0.0
        %797 = vmatprep.subr.mxu0 0.0
        %798 = vmatpush1.msra.mxu0 0.0
        %799 = vmatprep.subr.mxu0 0.0
        %800 = vmatpush1.msra.mxu0 0.0
        %801 = vmatprep.subr.mxu0 0.0
        %802 = vmatpush1.msra.mxu0 0.0
        %803 = vmatprep.subr.mxu0 0.0
        %804 = vmatpush1.msra.mxu0 0.0
        %805 = vmatprep.subr.mxu0 0.0
        %806 = vmatpush1.msra.mxu0 0.0
        %807 = vmatprep.subr.mxu0 0.0
        %808 = vmatpush1.msra.mxu0 0.0
        %809 = vmatprep.subr.mxu0 0.0
        %810 = vmatpush1.msra.mxu0 0.0
        %811 = vmatprep.subr.mxu0 0.0
        %812 = vmatpush1.msra.mxu0 0.0
        %813 = vmatprep.subr.mxu0 0.0
        %814 = vmatpush1.msra.mxu0 0.0
        %815 = vmatprep.subr.mxu0 0.0
        %816 = vmatpush1.msra.mxu0 0.0
        %817 = vmatprep.subr.mxu0 0.0
        %818 = vmatpush1.msra.mxu0 0.0
        %819 = vmatprep.subr.mxu0 0.0
        %820 = vmatpush1.msra.mxu0 0.0
        %821 = vmatprep.subr.mxu0 0.0
        %822 = vmatpush1.msra.mxu0 0.0
        %823 = vmatprep.subr.mxu0 0.0
        %824 = vmatpush1.msra.mxu0 0.0
        %825 = vmatprep.subr.mxu0 0.0
        %826 = vmatpush1.msra.mxu0 0.0
        %827 = vmatprep.subr.mxu0 0.0
        %828 = vmatpush1.msra.mxu0 0.0
        %829 = vmatprep.subr.mxu0 0.0
        %830 = vmatpush1.msra.mxu0 0.0
        %831 = vmatprep.subr.mxu0 0.0
        %832 = vmatpush1.msra.mxu0 0.0
        %833 = vmatprep.subr.mxu0 0.0
        %834 = vmatpush1.msra.mxu0 0.0
        %835 = vmatprep.subr.mxu0 0.0
        %836 = vmatpush1.msra.mxu0 0.0
        %837 = vmatprep.subr.mxu0 0.0
        %838 = vmatpush1.msra.mxu0 0.0
        %839 = vmatprep.subr.mxu0 0.0
        %840 = vmatpush1.msra.mxu0 0.0
        %841 = vmatprep.subr.mxu0 0.0
        %842 = vmatpush1.msra.mxu0 0.0
        %843 = vmatprep.subr.mxu0 0.0
        %844 = vmatpush1.msra.mxu0 0.0
        %845 = vmatprep.subr.mxu0 0.0
        %846 = vmatpush1.msra.mxu0 0.0
        %847 = vmatprep.subr.mxu0 0.0
        %848 = vmatpush1.msra.mxu0 0.0
        %849 = vmatprep.mubr.f32.mxu0 0.0
        %850 = vmatmul.mubr.f32.gmra.mrb[0].mxu0 %v783
        %v851 = vpop.f32.mrb[0].mxu0
        %v852 = vadd.f32 0.0, %v851
        %v853 = vpop.f32.mrb[0].mxu0
        %854 = vdwg.mxu0
        %v856 = vsel %vm737, %v779, 0
        %858 = vmatprep.subr.mxu0 0.0
        %859 = vmatpush1.msra.mxu0 %v415
        %860 = vmatprep.subr.mxu0 0.0
        %861 = vmatpush1.msra.mxu0 0.0
        %862 = vmatprep.subr.mxu0 0.0
        %863 = vmatpush1.msra.mxu0 0.0
        %864 = vmatprep.subr.mxu0 0.0
        %865 = vmatpush1.msra.mxu0 0.0
        %866 = vmatprep.subr.mxu0 0.0
        %867 = vmatpush1.msra.mxu0 0.0
        %868 = vmatprep.subr.mxu0 0.0
        %869 = vmatpush1.msra.mxu0 0.0
        %870 = vmatprep.subr.mxu0 0.0
        %871 = vmatpush1.msra.mxu0 0.0
        %872 = vmatprep.subr.mxu0 0.0
        %873 = vmatpush1.msra.mxu0 0.0
        %874 = vmatprep.subr.mxu0 0.0
        %875 = vmatpush1.msra.mxu0 0.0
        %876 = vmatprep.subr.mxu0 0.0
        %877 = vmatpush1.msra.mxu0 0.0
        %878 = vmatprep.subr.mxu0 0.0
        %879 = vmatpush1.msra.mxu0 0.0
        %880 = vmatprep.subr.mxu0 0.0
        %881 = vmatpush1.msra.mxu0 0.0
        %882 = vmatprep.subr.mxu0 0.0
        %883 = vmatpush1.msra.mxu0 0.0
        %884 = vmatprep.subr.mxu0 0.0
        %885 = vmatpush1.msra.mxu0 0.0
        %886 = vmatprep.subr.mxu0 0.0
        %887 = vmatpush1.msra.mxu0 0.0
        %888 = vmatprep.subr.mxu0 0.0
        %889 = vmatpush1.msra.mxu0 0.0
        %890 = vmatprep.subr.mxu0 0.0
        %891 = vmatpush1.msra.mxu0 0.0
        %892 = vmatprep.subr.mxu0 0.0
        %893 = vmatpush1.msra.mxu0 0.0
        %894 = vmatprep.subr.mxu0 0.0
        %895 = vmatpush1.msra.mxu0 0.0
        %896 = vmatprep.subr.mxu0 0.0
        %897 = vmatpush1.msra.mxu0 0.0
        %898 = vmatprep.subr.mxu0 0.0
        %899 = vmatpush1.msra.mxu0 0.0
        %900 = vmatprep.subr.mxu0 0.0
        %901 = vmatpush1.msra.mxu0 0.0
        %902 = vmatprep.subr.mxu0 0.0
        %903 = vmatpush1.msra.mxu0 0.0
        %904 = vmatprep.subr.mxu0 0.0
        %905 = vmatpush1.msra.mxu0 0.0
        %906 = vmatprep.subr.mxu0 0.0
        %907 = vmatpush1.msra.mxu0 0.0
        %908 = vmatprep.subr.mxu0 0.0
        %909 = vmatpush1.msra.mxu0 0.0
        %910 = vmatprep.subr.mxu0 0.0
        %911 = vmatpush1.msra.mxu0 0.0
        %912 = vmatprep.subr.mxu0 0.0
        %913 = vmatpush1.msra.mxu0 0.0
        %914 = vmatprep.subr.mxu0 0.0
        %915 = vmatpush1.msra.mxu0 0.0
        %916 = vmatprep.subr.mxu0 0.0
        %917 = vmatpush1.msra.mxu0 0.0
        %918 = vmatprep.subr.mxu0 0.0
        %919 = vmatpush1.msra.mxu0 0.0
        %920 = vmatprep.subr.mxu0 0.0
        %921 = vmatpush1.msra.mxu0 0.0
        %922 = vmatprep.mubr.f32.mxu0 0.0
        %923 = vmatmul.mubr.f32.gmra.mrb[0].mxu0 %v856
        %v924 = vpop.f32.mrb[0].mxu0
        %v925 = vadd.f32 0.0, %v924
        %v926 = vpop.f32.mrb[0].mxu0
        %927 = vdwg.mxu0
        %v929 = vsel %vm737, %v780, 0
        %931 = vmatprep.subr.mxu0 0.0
        %932 = vmatpush1.msra.mxu0 %v416
        %933 = vmatprep.subr.mxu0 0.0
        %934 = vmatpush1.msra.mxu0 0.0
        %935 = vmatprep.subr.mxu0 0.0
        %936 = vmatpush1.msra.mxu0 0.0
        %937 = vmatprep.subr.mxu0 0.0
        %938 = vmatpush1.msra.mxu0 0.0
        %939 = vmatprep.subr.mxu0 0.0
        %940 = vmatpush1.msra.mxu0 0.0
        %941 = vmatprep.subr.mxu0 0.0
        %942 = vmatpush1.msra.mxu0 0.0
        %943 = vmatprep.subr.mxu0 0.0
        %944 = vmatpush1.msra.mxu0 0.0
        %945 = vmatprep.subr.mxu0 0.0
        %946 = vmatpush1.msra.mxu0 0.0
        %947 = vmatprep.subr.mxu0 0.0
        %948 = vmatpush1.msra.mxu0 0.0
        %949 = vmatprep.subr.mxu0 0.0
        %950 = vmatpush1.msra.mxu0 0.0
        %951 = vmatprep.subr.mxu0 0.0
        %952 = vmatpush1.msra.mxu0 0.0
        %953 = vmatprep.subr.mxu0 0.0
        %954 = vmatpush1.msra.mxu0 0.0
        %955 = vmatprep.subr.mxu0 0.0
        %956 = vmatpush1.msra.mxu0 0.0
        %957 = vmatprep.subr.mxu0 0.0
        %958 = vmatpush1.msra.mxu0 0.0
        %959 = vmatprep.subr.mxu0 0.0
        %960 = vmatpush1.msra.mxu0 0.0
        %961 = vmatprep.subr.mxu0 0.0
        %962 = vmatpush1.msra.mxu0 0.0
        %963 = vmatprep.subr.mxu0 0.0
        %964 = vmatpush1.msra.mxu0 0.0
        %965 = vmatprep.subr.mxu0 0.0
        %966 = vmatpush1.msra.mxu0 0.0
        %967 = vmatprep.subr.mxu0 0.0
        %968 = vmatpush1.msra.mxu0 0.0
        %969 = vmatprep.subr.mxu0 0.0
        %970 = vmatpush1.msra.mxu0 0.0
        %971 = vmatprep.subr.mxu0 0.0
        %972 = vmatpush1.msra.mxu0 0.0
        %973 = vmatprep.subr.mxu0 0.0
        %974 = vmatpush1.msra.mxu0 0.0
        %975 = vmatprep.subr.mxu0 0.0
        %976 = vmatpush1.msra.mxu0 0.0
        %977 = vmatprep.subr.mxu0 0.0
        %978 = vmatpush1.msra.mxu0 0.0
        %979 = vmatprep.subr.mxu0 0.0
        %980 = vmatpush1.msra.mxu0 0.0
        %981 = vmatprep.subr.mxu0 0.0
        %982 = vmatpush1.msra.mxu0 0.0
        %983 = vmatprep.subr.mxu0 0.0
        %984 = vmatpush1.msra.mxu0 0.0
        %985 = vmatprep.subr.mxu0 0.0
        %986 = vmatpush1.msra.mxu0 0.0
        %987 = vmatprep.subr.mxu0 0.0
        %988 = vmatpush1.msra.mxu0 0.0
        %989 = vmatprep.subr.mxu0 0.0
        %990 = vmatpush1.msra.mxu0 0.0
        %991 = vmatprep.subr.mxu0 0.0
        %992 = vmatpush1.msra.mxu0 0.0
        %993 = vmatprep.subr.mxu0 0.0
        %994 = vmatpush1.msra.mxu0 0.0
        %995 = vmatprep.mubr.f32.mxu0 0.0
        %996 = vmatmul.mubr.f32.gmra.mrb[0].mxu0 %v929
        %v997 = vpop.f32.mrb[0].mxu0
        %v998 = vadd.f32 0.0, %v997
        %v999 = vpop.f32.mrb[0].mxu0
        %1000 = vdwg.mxu0
        %v1002 = vsel %vm737, %v781, 0
        %1004 = vmatprep.subr.mxu0 0.0
        %1005 = vmatpush1.msra.mxu0 %v417
        %1006 = vmatprep.subr.mxu0 0.0
        %1007 = vmatpush1.msra.mxu0 0.0
        %1008 = vmatprep.subr.mxu0 0.0
        %1009 = vmatpush1.msra.mxu0 0.0
        %1010 = vmatprep.subr.mxu0 0.0
        %1011 = vmatpush1.msra.mxu0 0.0
        %1012 = vmatprep.subr.mxu0 0.0
        %1013 = vmatpush1.msra.mxu0 0.0
        %1014 = vmatprep.subr.mxu0 0.0
        %1015 = vmatpush1.msra.mxu0 0.0
        %1016 = vmatprep.subr.mxu0 0.0
        %1017 = vmatpush1.msra.mxu0 0.0
        %1018 = vmatprep.subr.mxu0 0.0
        %1019 = vmatpush1.msra.mxu0 0.0
        %1020 = vmatprep.subr.mxu0 0.0
        %1021 = vmatpush1.msra.mxu0 0.0
        %1022 = vmatprep.subr.mxu0 0.0
        %1023 = vmatpush1.msra.mxu0 0.0
        %1024 = vmatprep.subr.mxu0 0.0
        %1025 = vmatpush1.msra.mxu0 0.0
        %1026 = vmatprep.subr.mxu0 0.0
        %1027 = vmatpush1.msra.mxu0 0.0
        %1028 = vmatprep.subr.mxu0 0.0
        %1029 = vmatpush1.msra.mxu0 0.0
        %1030 = vmatprep.subr.mxu0 0.0
        %1031 = vmatpush1.msra.mxu0 0.0
        %1032 = vmatprep.subr.mxu0 0.0
        %1033 = vmatpush1.msra.mxu0 0.0
        %1034 = vmatprep.subr.mxu0 0.0
        %1035 = vmatpush1.msra.mxu0 0.0
        %1036 = vmatprep.subr.mxu0 0.0
        %1037 = vmatpush1.msra.mxu0 0.0
        %1038 = vmatprep.subr.mxu0 0.0
        %1039 = vmatpush1.msra.mxu0 0.0
        %1040 = vmatprep.subr.mxu0 0.0
        %1041 = vmatpush1.msra.mxu0 0.0
        %1042 = vmatprep.subr.mxu0 0.0
        %1043 = vmatpush1.msra.mxu0 0.0
        %1044 = vmatprep.subr.mxu0 0.0
        %1045 = vmatpush1.msra.mxu0 0.0
        %1046 = vmatprep.subr.mxu0 0.0
        %1047 = vmatpush1.msra.mxu0 0.0
        %1048 = vmatprep.subr.mxu0 0.0
        %1049 = vmatpush1.msra.mxu0 0.0
        %1050 = vmatprep.subr.mxu0 0.0
        %1051 = vmatpush1.msra.mxu0 0.0
        %1052 = vmatprep.subr.mxu0 0.0
        %1053 = vmatpush1.msra.mxu0 0.0
        %1054 = vmatprep.subr.mxu0 0.0
        %1055 = vmatpush1.msra.mxu0 0.0
        %1056 = vmatprep.subr.mxu0 0.0
        %1057 = vmatpush1.msra.mxu0 0.0
        %1058 = vmatprep.subr.mxu0 0.0
        %1059 = vmatpush1.msra.mxu0 0.0
        %1060 = vmatprep.subr.mxu0 0.0
        %1061 = vmatpush1.msra.mxu0 0.0
        %1062 = vmatprep.subr.mxu0 0.0
        %1063 = vmatpush1.msra.mxu0 0.0
        %1064 = vmatprep.subr.mxu0 0.0
        %1065 = vmatpush1.msra.mxu0 0.0
        %1066 = vmatprep.subr.mxu0 0.0
        %1067 = vmatpush1.msra.mxu0 0.0
        %1068 = vmatprep.mubr.f32.mxu0 0.0
        %1069 = vmatmul.mubr.f32.gmra.mrb[0].mxu0 %v1002
        %v1070 = vpop.f32.mrb[0].mxu0
        %v1071 = vadd.f32 0.0, %v1070
        %v1072 = vpop.f32.mrb[0].mxu0
        %1073 = vdwg.mxu0
        %1074 = vst.msk [vmem:[%s386] sm:$0xff] %vm422, %v852
        %1075 = vst.msk [vmem:[%s386 + $0x8] sm:$0xff] %vm422, %v925
        %1076 = vst.msk [vmem:[%s386 + $0x10] sm:$0xff] %vm422, %v998
        %1077 = vst.msk [vmem:[%s386 + $0x18] sm:$0xff] %vm422, %v1071
        %1078 = vst.msk [vmem:[%s393] sm:$0xff] %vm737, %v778
        %1079 = vst.msk [vmem:[%s393 + $0x8] sm:$0xff] %vm737, %v779
        %1080 = vst.msk [vmem:[%s393 + $0x10] sm:$0xff] %vm737, %v780
        %1081 = vst.msk [vmem:[%s393 + $0x18] sm:$0xff] %vm737, %v781
        %s1082 = sand.u32 %s174, 1
        %s1083 = scalar_lea.sflag [#allocation4], %s1082
        %s1084 = sand.u32 %s174, 1
        %s1085 = smul.addr %s1084, 32
        %s1086 = scalar_lea.vmem [#allocation8], %s1085
        %s1087 = sand.u32 %s204, 1
        %s1088 = scalar_lea.sflag [#allocation10], %s1087
        %s1089 = sand.u32 %s204, 1
        %s1090 = smul.addr %s1089, 32
        %s1091 = scalar_lea.vmem [#allocation9], %s1090
        // Predicated region
        $region49: #{tpu_custom_call.1} parent=35 // pred_check
          %p1092 = pneg %p184
        $region50: #{tpu_custom_call.1} parent=35 // pred_check_branch
          %1094 = sbr.rel (%p1092) target = $region52
        $region51: #{tpu_custom_call.1} parent=35 // pred_region
          %s1095 = smul.u32 4, %s35
          %s1097 = ssub.s32 512, 512
          %1098 = vsyncadd %s1083, %s1097
          %s1099 = sadd.s32 %s36, %s1095
          %s1100 = smul.addr %s34, 4
          %s1101 = sadd.s32 %s1099, %s1100
          %s1102 = smul.addr %s1101, 128
          %s1103 = scalar_lea.hbm %s4, %s1102
          %s1104 = sshll.u32 %s1086, 4
          %s1105 = int_to_ptr.vmem [resolvable:$true] %s1104
          %1110 = dma.vmem_to_hbm [thread:$0]  %s1105, 512, %s1103, %s1083, 128, 128, 8
        $region52: #{tpu_custom_call.1} parent=35 // pred_fallthru
          _
        // Predicated region
        $region53: #{tpu_custom_call.1} parent=35 // pred_check
          %p1111 = pneg %p214
        $region54: #{tpu_custom_call.1} parent=35 // pred_check_branch
          %1113 = sbr.rel (%p1111) target = $region56
        $region55: #{tpu_custom_call.1} parent=35 // pred_region
          %s1114 = smul.u32 4, %s35
          %s1116 = ssub.s32 512, 512
          %1117 = vsyncadd %s1088, %s1116
          %s1118 = sadd.s32 %s36, %s1114
          %s1119 = smul.addr %s34, 4
          %s1120 = sadd.s32 %s1118, %s1119
          %s1121 = smul.addr %s1120, 128
          %s1122 = scalar_lea.hbm %s5, %s1121
          %s1123 = sshll.u32 %s1091, 4
          %s1124 = int_to_ptr.vmem [resolvable:$true] %s1123
          %1129 = dma.vmem_to_hbm [thread:$0]  %s1124, 512, %s1122, %s1088, 128, 128, 8
        $region56: #{tpu_custom_call.1} parent=35 // pred_fallthru
          _
      $region36: #{tpu_custom_call.1} parent=5 // pred_fallthru
        _
      %p1130 = scmp.le.s32.totalorder 2, %s24
      // Predicated region
      $region57: #{tpu_custom_call.1} parent=5 // pred_check
        %p1131 = pneg %p1130
      $region58: #{tpu_custom_call.1} parent=5 // pred_check_branch
        %1133 = sbr.rel (%p1131) target = $region60
      $region59: #{tpu_custom_call.1} parent=5 // pred_region
        %s1134 = ssub.s32 %s24, 2
        // Predicated region
        $region61: #{tpu_custom_call.1} parent=59 // pred_check
          %p1135 = pneg %p190
        $region62: #{tpu_custom_call.1} parent=59 // pred_check_branch
          %1137 = sbr.rel (%p1135) target = $region64
        $region63: #{tpu_custom_call.1} parent=59 // pred_region
          %s1138 = sand.u32 %s175, 1
          %s1139 = scalar_lea.sflag [#allocation4], %s1138
          %s1140 = sand.u32 %s175, 1
          %s1141 = smul.addr %s1140, 32
          %s1142 = scalar_lea.vmem [#allocation8], %s1141
          %1143 = dma.done %s1139, 512
        $region64: #{tpu_custom_call.1} parent=59 // pred_fallthru
          _
        // Predicated region
        $region65: #{tpu_custom_call.1} parent=59 // pred_check
          %p1144 = pneg %p220
        $region66: #{tpu_custom_call.1} parent=59 // pred_check_branch
          %1146 = sbr.rel (%p1144) target = $region68
        $region67: #{tpu_custom_call.1} parent=59 // pred_region
          %s1147 = sand.u32 %s205, 1
          %s1148 = scalar_lea.sflag [#allocation10], %s1147
          %s1149 = sand.u32 %s205, 1
          %s1150 = smul.addr %s1149, 32
          %s1151 = scalar_lea.vmem [#allocation9], %s1150
          %1152 = dma.done %s1148, 512
        $region68: #{tpu_custom_call.1} parent=59 // pred_fallthru
          _
      $region60: #{tpu_custom_call.1} parent=5 // pred_fallthru
        _
    $region6: #{tpu_custom_call.1} parent=1 // loop_footer
      %s28 = sadd.s32 1, %s24
    $region7: #{tpu_custom_call.1} parent=1 // loop_footer_branch
      %23 = sbr.rel target = $region3
    $region8: #{tpu_custom_call.1} parent=1 // loop_exit
      _
    %1153 = vsyncpa [#allocation3], 1
    %s1154 = scalar_lea.sflag [#allocation3], 1
    %1155 = vsyncpa %s1154, 1
    %1156 = vsyncpa [#allocation6], 1
    %s1157 = scalar_lea.sflag [#allocation6], 1
    %1158 = vsyncpa %s1157, 1
    %1159 = vsyncpa [#allocation4], 1
    %s1160 = scalar_lea.sflag [#allocation4], 1
    %1161 = vsyncpa %s1160, 1
    %1162 = vsyncpa [#allocation10], 1
    %s1163 = scalar_lea.sflag [#allocation10], 1
    %1164 = vsyncpa %s1163, 1

</llo_original>
